<compile_context>
chip_gen: v6e
topology: v6e:2x2x1
jax: 0.10.0
libtpu: 0.0.40
codegen_flags: <defaults>
</compile_context>

<pallas_src>
import functools

import jax
import jax.numpy as jnp
from jax import lax
from jax.experimental import pallas as pl
from jax.experimental.pallas import tpu as pltpu

_LANES = 128
_SINGLE_SHOT_BYTES = 10 * 1024 * 1024   # safe under v5e(16)/v6e(32)/v7x(32 MiB) defaults


# --------------------------------------------------------------------------
# Single-shot fused kernel: conv + batch stats + BN + LeakyReLU, all resident.
# --------------------------------------------------------------------------
def _fused_kernel(params_ref, x1_ref, x2_ref, o_ref, *,
                  inv_n, eps, neg_slope, n_valid, needs_mask):
    # params (SMEM f32[5]): [w0, w1, conv_bias, gamma, beta]
    w0 = params_ref[0]
    w1 = params_ref[1]
    cb = params_ref[2]
    gamma = params_ref[3]
    beta = params_ref[4]

    x1 = x1_ref[...].astype(jnp.float32)
    x2 = x2_ref[...].astype(jnp.float32)
    y = w0 * x1 + w1 * x2 + cb

    if needs_mask:
        # Only the zero-padded lane tail is invalid; exclude it from the stats
        # (y == conv_bias there, which would bias the moments).
        row = lax.broadcasted_iota(jnp.int32, y.shape, 0)
        lane = lax.broadcasted_iota(jnp.int32, y.shape, 1)
        ys = jnp.where(row * _LANES + lane < n_valid, y, 0.0)
    else:
        ys = y

    s1 = jnp.sum(ys)
    s2 = jnp.sum(ys * ys)
    mean = s1 * inv_n
    var = jnp.maximum(s2 * inv_n - mean * mean, 0.0)   # clamp (cancellation)
    scale = gamma * lax.rsqrt(var + eps)
    shift = beta - mean * scale

    z = y * scale + shift
    o_ref[...] = jnp.where(z >= 0.0, z, neg_slope * z).astype(o_ref.dtype)


# --------------------------------------------------------------------------
# Two-pass path, pass 1: per-tile lane-vector partial moments (fully parallel).
# --------------------------------------------------------------------------
def _partials_kernel(params_ref, x1_ref, x2_ref, part_ref, *,
                     tile_rows, n_valid, nt, needs_mask):
    # params (SMEM f32[>=3]): [w0, w1, conv_bias, ...]
    i = pl.program_id(0)
    w0 = params_ref[0]
    w1 = params_ref[1]
    cb = params_ref[2]

    x1 = x1_ref[...].astype(jnp.float32)
    x2 = x2_ref[...].astype(jnp.float32)
    y = w0 * x1 + w1 * x2 + cb

    def write_partials(yv):
        ps = jnp.sum(yv, axis=0, keepdims=True)        # (1,128) sublane reduce
        psq = jnp.sum(yv * yv, axis=0, keepdims=True)  # (1,128)
        part_ref[...] = jnp.concatenate([ps, psq], axis=0)[None]   # (1,2,128)

    if needs_mask:
        # Only the last tile can contain invalid data (Pallas ragged-block
        # padding and/or the zero-padded lane tail); keep the mask off the hot
        # path for all other tiles.
        @pl.when(i < nt - 1)
        def _():
            write_partials(y)

        @pl.when(i == nt - 1)
        def _():
            row = lax.broadcasted_iota(jnp.int32, y.shape, 0)
            lane = lax.broadcasted_iota(jnp.int32, y.shape, 1)
            limit = n_valid - i * (tile_rows * _LANES)   # per-tile threshold
            write_partials(jnp.where(row * _LANES + lane < limit, y, 0.0))
    else:
        write_partials(y)


# --------------------------------------------------------------------------
# Two-pass path, pass 2: apply pre-folded coefficients + LeakyReLU.
# --------------------------------------------------------------------------
def _apply_kernel(coef_ref, x1_ref, x2_ref, o_ref, *, neg_slope):
    # coef (SMEM f32[3]): [w0*scale, w1*scale, (cb-mean)*scale + beta]
    w0 = coef_ref[0]
    w1 = coef_ref[1]
    b = coef_ref[2]
    x1 = x1_ref[...].astype(jnp.float32)
    x2 = x2_ref[...].astype(jnp.float32)
    y = w0 * x1 + w1 * x2 + b
    o_ref[...] = jnp.where(y >= 0.0, y, neg_slope * y).astype(o_ref.dtype)


# --------------------------------------------------------------------------
# Wrapper
# --------------------------------------------------------------------------
def context_forward(x1, x2, conv_w, conv_b, bn_gamma, bn_beta,
                    eps=1e-5, negative_slope=0.2,
                    _force_two_pass=False, _tile_rows=None):
    """x1, x2: (B, H, W) or (B, 1, H, W).  Returns (B, 1, H, W) in x1.dtype."""
    if x1.ndim == 4:  # torch.cat path with single-channel inputs
        x1 = x1[:, 0]
        x2 = x2[:, 0]
    assert x1.ndim == 3 and x1.shape == x2.shape
    B, H, W = x1.shape
    n = B * H * W
    out_dtype = x1.dtype

    # ---- lane-dense layout: (rows, 128); pad only the (rare) lane tail ----
    rows = pl.cdiv(n, _LANES)
    lane_pad = rows * _LANES - n          # < 128; 0 for the typical pow-2 case
    x1f = x1.reshape(-1)
    x2f = x2.reshape(-1)
    if lane_pad:
        x1f = jnp.pad(x1f, (0, lane_pad))
        x2f = jnp.pad(x2f, (0, lane_pad))
    x1t = x1f.reshape(rows, _LANES)
    x2t = x2f.reshape(rows, _LANES)

    # ---- normalize parameter shapes (PyTorch Conv2d weight is (1,2,1,1)) ----
    wflat = jnp.asarray(conv_w, jnp.float32).reshape(-1)
    w0 = wflat[0]
    w1 = wflat[1]
    cbv = jnp.asarray(conv_b, jnp.float32).reshape(-1)[0]
    g = jnp.asarray(bn_gamma, jnp.float32).reshape(-1)[0]
    bt = jnp.asarray(bn_beta, jnp.float32).reshape(-1)[0]
    params = jnp.stack([w0, w1, cbv, g, bt])

    in_bytes = x1t.dtype.itemsize
    out_bytes = jnp.dtype(out_dtype).itemsize
    elems = rows * _LANES

    # footprint: x1 + x2 + out + f32 temp, all fully VMEM-resident
    vmem_need = (2 * in_bytes + out_bytes + 4) * elems

    if (not _force_two_pass) and vmem_need <= _SINGLE_SHOT_BYTES:
        # -------- single-shot fused path (reads HBM once, one launch) --------
        out2d = pl.pallas_call(
            functools.partial(_fused_kernel, inv_n=1.0 / n, eps=float(eps),
                              neg_slope=float(negative_slope), n_valid=n,
                              needs_mask=bool(lane_pad)),
            grid=(1,),
            out_shape=jax.ShapeDtypeStruct((rows, _LANES), out_dtype),
            in_specs=[
                pl.BlockSpec(memory_space=pltpu.MemorySpace.SMEM),   # params
                pl.BlockSpec((rows, _LANES), lambda i: (0, 0)),      # x1
                pl.BlockSpec((rows, _LANES), lambda i: (0, 0)),      # x2
            ],
            out_specs=pl.BlockSpec((rows, _LANES), lambda i: (0, 0)),
            cost_estimate=pl.CostEstimate(
                flops=10 * elems, transcendentals=1,
                bytes_accessed=(2 * in_bytes + out_bytes) * elems),
        )(params, x1t, x2t)
    else:
        # -------------------------- two-pass path ----------------------------
        sub = 16 if x1t.dtype == jnp.bfloat16 else 8
        tile_rows = _tile_rows if _tile_rows is not None else min(
            2048, ((rows + sub - 1) // sub) * sub)
        nt = pl.cdiv(rows, tile_rows)
        needs_mask = (rows % tile_rows != 0) or bool(lane_pad)

        # pass 1: per-tile lane-vector partial moments, fully parallel grid
        partials = pl.pallas_call(
            functools.partial(_partials_kernel, tile_rows=tile_rows,
                              n_valid=n, nt=nt, needs_mask=needs_mask),
            grid=(nt,),
            out_shape=jax.ShapeDtypeStruct((nt, 2, _LANES), jnp.float32),
            in_specs=[
                pl.BlockSpec(memory_space=pltpu.MemorySpace.SMEM),       # params
                pl.BlockSpec((tile_rows, _LANES), lambda i: (i, 0)),     # x1
                pl.BlockSpec((tile_rows, _LANES), lambda i: (i, 0)),     # x2
            ],
            out_specs=pl.BlockSpec((1, 2, _LANES), lambda i: (i, 0, 0)),
            compiler_params=pltpu.CompilerParams(
                dimension_semantics=("parallel",)),
            cost_estimate=pl.CostEstimate(
                flops=6 * elems, transcendentals=0,
                bytes_accessed=2 * in_bytes * elems),
        )(params, x1t, x2t)

        # tiny reduction + BN scalar fold in XLA (hoisted out of pass 2)
        s = jnp.sum(partials, axis=(0, 2))              # [sum, sumsq]
        mean = s[0] * (1.0 / n)
        var = jnp.maximum(s[1] * (1.0 / n) - mean * mean, 0.0)
        scale = g * lax.rsqrt(var + jnp.float32(eps))
        coefs = jnp.stack([w0 * scale, w1 * scale, (cbv - mean) * scale + bt])

        # pass 2: apply folded affine + LeakyReLU, fully parallel grid
        out2d = pl.pallas_call(
            functools.partial(_apply_kernel,
                              neg_slope=float(negative_slope)),
            grid=(nt,),
            out_shape=jax.ShapeDtypeStruct((rows, _LANES), out_dtype),
            in_specs=[
                pl.BlockSpec(memory_space=pltpu.MemorySpace.SMEM),       # coefs
                pl.BlockSpec((tile_rows, _LANES), lambda i: (i, 0)),     # x1
                pl.BlockSpec((tile_rows, _LANES), lambda i: (i, 0)),     # x2
            ],
            out_specs=pl.BlockSpec((tile_rows, _LANES), lambda i: (i, 0)),
            compiler_params=pltpu.CompilerParams(
                dimension_semantics=("parallel",)),
            cost_estimate=pl.CostEstimate(
                flops=6 * elems, transcendentals=0,
                bytes_accessed=(2 * in_bytes + out_bytes) * elems),
        )(coefs, x1t, x2t)

    if lane_pad:
        return out2d.reshape(-1)[:n].reshape(B, 1, H, W)
    return out2d.reshape(B, 1, H, W)


# --------------------------------------------------------------------------
# Pure-JAX reference
# --------------------------------------------------------------------------
def _reference(x1, x2, conv_w, conv_b, bn_gamma, bn_beta,
               eps=1e-5, negative_slope=0.2):
    w = jnp.asarray(conv_w, jnp.float32).reshape(-1)
    y = w[0] * x1 + w[1] * x2 + jnp.asarray(conv_b, jnp.float32).reshape(-1)[0]
    mean = jnp.mean(y)
    var = jnp.mean((y - mean) ** 2)
    y = (y - mean) / jnp.sqrt(var + eps)
    y = y * jnp.asarray(bn_gamma, jnp.float32).reshape(-1)[0] \
        + jnp.asarray(bn_beta, jnp.float32).reshape(-1)[0]
    y = jnp.where(y >= 0.0, y, negative_slope * y)
    return y.reshape(y.shape[0], 1, y.shape[1], y.shape[2])


if __name__ == "__main__":
    key = jax.random.PRNGKey(0)
    k1, k2, kw, k3, k4 = jax.random.split(key, 5)

    # init_weights-style params: conv ~ N(0, 0.02), bias 0, BN gamma=1, beta=0.
    conv_w = jax.random.normal(kw, (1, 2, 1, 1), dtype=jnp.float32) * 0.02
    conv_b = jnp.zeros((1,), jnp.float32)
    bn_gamma = jnp.ones((1,), jnp.float32)
    bn_beta = jnp.zeros((1,), jnp.float32)

    # --- small shape -> single-shot fused path ---
    B, H, W = 2, 16, 16
    x1 = jax.random.normal(k1, (B, H, W), dtype=jnp.float32)
    x2 = jax.random.normal(k2, (B, H, W), dtype=jnp.float32)
    out = jax.block_until_ready(
        context_forward(x1, x2, conv_w, conv_b, bn_gamma, bn_beta))
    ref = _reference(x1, x2, conv_w, conv_b, bn_gamma, bn_beta)
    assert out.shape == (B, 1, H, W)
    assert jnp.allclose(out, ref, atol=1e-5, rtol=1e-5), \
        float(jnp.max(jnp.abs(out - ref)))

    # --- exercise the tiled two-pass path (forced, small tiles, ragged tail) ---
    B2, H2, W2 = 4, 24, 24            # n = 2304 = 18 * 128 rows
    y1 = jax.random.normal(k3, (B2, H2, W2), dtype=jnp.float32)
    y2 = jax.random.normal(k4, (B2, H2, W2), dtype=jnp.float32)
    out2 = jax.block_until_ready(
        context_forward(y1, y2, conv_w, conv_b, bn_gamma, bn_beta,
                        _force_two_pass=True, _tile_rows=8))
    ref2 = _reference(y1, y2, conv_w, conv_b, bn_gamma, bn_beta)
    assert out2.shape == (B2, 1, H2, W2)
    assert jnp.allclose(out2, ref2, atol=1e-5, rtol=1e-5), \
        float(jnp.max(jnp.abs(out2 - ref2)))

    print("KERNEL_OK")
</pallas_src>

<mosaic_0001>
module attributes {stable_mosaic.version = 11 : i64} {
  func.func @_fused_kernel(%arg0: i32, %arg1: memref<5xf32, #tpu.memory_space<smem>>, %arg2: memref<4x128xf32, #tpu.memory_space<vmem>>, %arg3: memref<4x128xf32, #tpu.memory_space<vmem>>, %arg4: memref<4x128xf32, #tpu.memory_space<vmem>>) attributes {dimension_semantics = [#tpu.dimension_semantics<arbitrary>], iteration_bounds = array<i64: 1>, scalar_prefetch = 0 : i64, scratch_operands = 0 : i64, tpu.core_type = #tpu.core_type<tc>, window_params = [{transform_indices = @transform_0, window_bounds = array<i64: 5>}, {pipeline_mode = #tpu.pipeline_mode<synchronous>, transform_indices = @transform_1, window_bounds = array<i64: 4, 128>}, {pipeline_mode = #tpu.pipeline_mode<synchronous>, transform_indices = @transform_2, window_bounds = array<i64: 4, 128>}, {pipeline_mode = #tpu.pipeline_mode<synchronous>, transform_indices = @transform_3, window_bounds = array<i64: 4, 128>}]} {
    %c0 = arith.constant 0 : index
    %0 = memref.load %arg1[%c0] : memref<5xf32, #tpu.memory_space<smem>>
    %c1 = arith.constant 1 : index
    %1 = memref.load %arg1[%c1] : memref<5xf32, #tpu.memory_space<smem>>
    %c2 = arith.constant 2 : index
    %2 = memref.load %arg1[%c2] : memref<5xf32, #tpu.memory_space<smem>>
    %c3 = arith.constant 3 : index
    %3 = memref.load %arg1[%c3] : memref<5xf32, #tpu.memory_space<smem>>
    %c4 = arith.constant 4 : index
    %4 = memref.load %arg1[%c4] : memref<5xf32, #tpu.memory_space<smem>>
    %c0_0 = arith.constant 0 : index
    %c0_1 = arith.constant 0 : index
    %5 = vector.load %arg2[%c0_0, %c0_1] : memref<4x128xf32, #tpu.memory_space<vmem>>, vector<4x128xf32>
    %c0_2 = arith.constant 0 : index
    %c0_3 = arith.constant 0 : index
    %6 = vector.load %arg3[%c0_2, %c0_3] : memref<4x128xf32, #tpu.memory_space<vmem>>, vector<4x128xf32>
    %7 = vector.broadcast %0 : f32 to vector<4x128xf32>
    %8 = arith.mulf %7, %5 : vector<4x128xf32>
    %9 = vector.broadcast %1 : f32 to vector<4x128xf32>
    %10 = arith.mulf %9, %6 : vector<4x128xf32>
    %11 = arith.addf %8, %10 : vector<4x128xf32>
    %12 = vector.broadcast %2 : f32 to vector<4x128xf32>
    %13 = arith.addf %11, %12 : vector<4x128xf32>
    %14 = vector.shape_cast %13 : vector<4x128xf32> to vector<1x4x128xf32>
    %cst = arith.constant dense<0.000000e+00> : vector<1xf32>
    %15 = vector.multi_reduction <add>, %14, %cst [1, 2] : vector<1x4x128xf32> to vector<1xf32>
    %16 = vector.shape_cast %15 : vector<1xf32> to vector<1x1x1xf32>
    %17 = vector.extract %16[0, 0, 0] : f32 from vector<1x1x1xf32>
    %18 = arith.mulf %13, %13 : vector<4x128xf32>
    %19 = vector.shape_cast %18 : vector<4x128xf32> to vector<1x4x128xf32>
    %cst_4 = arith.constant dense<0.000000e+00> : vector<1xf32>
    %20 = vector.multi_reduction <add>, %19, %cst_4 [1, 2] : vector<1x4x128xf32> to vector<1xf32>
    %21 = vector.shape_cast %20 : vector<1xf32> to vector<1x1x1xf32>
    %22 = vector.extract %21[0, 0, 0] : f32 from vector<1x1x1xf32>
    %cst_5 = arith.constant 0.001953125 : f32
    %23 = arith.mulf %17, %cst_5 : f32
    %cst_6 = arith.constant 0.001953125 : f32
    %24 = arith.mulf %22, %cst_6 : f32
    %25 = arith.mulf %23, %23 : f32
    %26 = arith.subf %24, %25 : f32
    %cst_7 = arith.constant 0.000000e+00 : f32
    %27 = arith.maximumf %26, %cst_7 : f32
    %cst_8 = arith.constant 9.99999974E-6 : f32
    %28 = arith.addf %27, %cst_8 : f32
    %29 = math.rsqrt %28 : f32
    %30 = arith.mulf %3, %29 : f32
    %31 = arith.mulf %23, %30 : f32
    %32 = arith.subf %4, %31 : f32
    %33 = vector.broadcast %30 : f32 to vector<4x128xf32>
    %34 = arith.mulf %13, %33 : vector<4x128xf32>
    %35 = vector.broadcast %32 : f32 to vector<4x128xf32>
    %36 = arith.addf %34, %35 : vector<4x128xf32>
    %cst_9 = arith.constant 0.000000e+00 : f32
    %37 = vector.broadcast %cst_9 : f32 to vector<4x128xf32>
    %38 = arith.cmpf oge, %36, %37 : vector<4x128xf32>
    %cst_10 = arith.constant 2.000000e-01 : f32
    %39 = vector.broadcast %cst_10 : f32 to vector<4x128xf32>
    %40 = arith.mulf %39, %36 : vector<4x128xf32>
    %41 = arith.select %38, %36, %40 : vector<4x128xi1>, vector<4x128xf32>
    %c0_11 = arith.constant 0 : index
    %c0_12 = arith.constant 0 : index
    %42 = vector.load %arg4[%c0_11, %c0_12] : memref<4x128xf32, #tpu.memory_space<vmem>>, vector<4x128xf32>
    tpu.vector_store %arg4[%c0_11, %c0_12], %41 {strides = array<i32>} : memref<4x128xf32, #tpu.memory_space<vmem>>, vector<4x128xf32>,
    return
  }
  func.func @transform_0(%arg0: i32) -> i32 {
    %c0_i32 = arith.constant 0 : i32
    %c0_i32_0 = arith.constant 0 : i32
    return %c0_i32 : i32
  }
  func.func @transform_1(%arg0: i32) -> (i32, i32) {
    %c0_i32 = arith.constant 0 : i32
    %c0_i32_0 = arith.constant 0 : i32
    %c0_i32_1 = arith.constant 0 : i32
    return %c0_i32, %c0_i32_0 : i32, i32
  }
  func.func @transform_2(%arg0: i32) -> (i32, i32) {
    %c0_i32 = arith.constant 0 : i32
    %c0_i32_0 = arith.constant 0 : i32
    %c0_i32_1 = arith.constant 0 : i32
    return %c0_i32, %c0_i32_0 : i32, i32
  }
  func.func @transform_3(%arg0: i32) -> (i32, i32) {
    %c0_i32 = arith.constant 0 : i32
    %c0_i32_0 = arith.constant 0 : i32
    %c0_i32_1 = arith.constant 0 : i32
    return %c0_i32, %c0_i32_0 : i32, i32
  }
}

</mosaic_0001>

<llo_original>
// kernel: tpu_custom_call.1
$region0: #{tpu_custom_call.1}
  #allocation0 [shape = 'u32[]', space=smem, size = 0x4, offset = 0x4, fixed_abs, tag = 'smem constant byte address 0x4 - core index']
  #allocation1 [shape = 'u32[144,128]{1,0:T(1,128)}', space=vmem, size = 0x12000, scoped, tag = 'internal scratch']
  %s0 = inlined_call_operand.hbm [shape: f32[5], index: 0, kind: input, shape index: {}]
  %s1 = inlined_call_operand.hbm [shape: f32[4,128], index: 1, kind: input, shape index: {}]
  %s2 = inlined_call_operand.hbm [shape: f32[4,128], index: 2, kind: input, shape index: {}]
  %s3 = inlined_call_operand.hbm [shape: f32[4,128], index: 3, kind: output, shape index: {}]
  %s4 = sld [smem:[#allocation0]]
  $region34: #{tpu_custom_call.1} parent=0
    _
  %s6 = ssub.s32 1, %s4
  %s7 = scalar_select 0, %s6, %s4
  $region1: #{tpu_custom_call.1} parent=0
    #allocation2 [shape = 'u8[512]{0}', space=smem, size = 0x200, scoped, tag = 'input window, operand 0, single buffered']
    #allocation3 [shape = 's32[1]{0}', space=sflag, size = 0x4, scoped, tag = 'scoped memory for tpu_custom_call.1']
    #allocation4 [shape = 's32[1]{0}', space=sflag, size = 0x4, scoped, tag = 'scoped memory for tpu_custom_call.1']
    #allocation5 [shape = 's32[1]{0}', space=sflag, size = 0x4, scoped, tag = 'scoped memory for tpu_custom_call.1']
    #allocation6 [shape = 'u8[2048]{0}', space=vmem, size = 0x800, scoped, tag = 'input window, operand 1, single buffered']
    #allocation7 [shape = 'u8[2048]{0}', space=vmem, size = 0x800, scoped, tag = 'input window, operand 2, single buffered']
    #allocation8 [shape = 's32[1]{0}', space=sflag, size = 0x4, scoped, tag = 'scoped memory for tpu_custom_call.1']
    #allocation9 [shape = 'u8[2048]{0}', space=vmem, size = 0x800, scoped, tag = 'output window, operand 0, single buffered']
    %8 = vsyncpa [#allocation5], 0
    %9 = vsyncpa [#allocation3], 0
    %10 = vsyncpa [#allocation8], 0
    %11 = vsyncpa [#allocation4], 0
    // Predicated region
    $region2: #{tpu_custom_call.1} parent=1 // pred_check
      _
    $region3: #{tpu_custom_call.1} parent=1 // pred_check_branch
      %13 = sbr.rel (0) target = $region5
    $region4: #{tpu_custom_call.1} parent=1 // pred_region
      %s15 = ssub.s32 16, 16
      %16 = vsyncadd [#allocation5], %s15
      %19 = dma.hbm_to_smem %s0, 16, [#allocation2], [#allocation5]
    $region5: #{tpu_custom_call.1} parent=1 // pred_fallthru
      _
    // Predicated region
    $region6: #{tpu_custom_call.1} parent=1 // pred_check
      _
    $region7: #{tpu_custom_call.1} parent=1 // pred_check_branch
      %21 = sbr.rel (0) target = $region9
    $region8: #{tpu_custom_call.1} parent=1 // pred_region
      %s23 = ssub.s32 64, 64
      %24 = vsyncadd [#allocation3], %s23
      %s26 = sshll.u32 [#allocation6], 4
      %s27 = int_to_ptr.vmem [resolvable:$true] %s26
      %29 = dma.hbm_to_vmem [thread:$0]  %s1, 64, %s27, [#allocation3]
    $region9: #{tpu_custom_call.1} parent=1 // pred_fallthru
      _
    // Predicated region
    $region10: #{tpu_custom_call.1} parent=1 // pred_check
      _
    $region11: #{tpu_custom_call.1} parent=1 // pred_check_branch
      %31 = sbr.rel (0) target = $region13
    $region12: #{tpu_custom_call.1} parent=1 // pred_region
      %s33 = ssub.s32 64, 64
      %34 = vsyncadd [#allocation8], %s33
      %s36 = sshll.u32 [#allocation7], 4
      %s37 = int_to_ptr.vmem [resolvable:$true] %s36
      %39 = dma.hbm_to_vmem [thread:$0]  %s2, 64, %s37, [#allocation8]
    $region13: #{tpu_custom_call.1} parent=1 // pred_fallthru
      _
    // Predicated region
    $region14: #{tpu_custom_call.1} parent=1 // pred_check
      _
    $region15: #{tpu_custom_call.1} parent=1 // pred_check_branch
      %41 = sbr.rel (0) target = $region17
    $region16: #{tpu_custom_call.1} parent=1 // pred_region
      %42 = dma.done [#allocation5], 16
    $region17: #{tpu_custom_call.1} parent=1 // pred_fallthru
      _
    // Predicated region
    $region18: #{tpu_custom_call.1} parent=1 // pred_check
      _
    $region19: #{tpu_custom_call.1} parent=1 // pred_check_branch
      %44 = sbr.rel (0) target = $region21
    $region20: #{tpu_custom_call.1} parent=1 // pred_region
      %45 = dma.done [#allocation3], 64
    $region21: #{tpu_custom_call.1} parent=1 // pred_fallthru
      _
    // Predicated region
    $region22: #{tpu_custom_call.1} parent=1 // pred_check
      _
    $region23: #{tpu_custom_call.1} parent=1 // pred_check_branch
      %47 = sbr.rel (0) target = $region25
    $region24: #{tpu_custom_call.1} parent=1 // pred_region
      %48 = dma.done [#allocation8], 64
    $region25: #{tpu_custom_call.1} parent=1 // pred_fallthru
      _
    %49 = sfence
    %s50 = sld [smem:[#allocation2]]
    %s51 = sld [smem:[#allocation2 + $0x1]]
    %s52 = sld [smem:[#allocation2 + $0x2]]
    %s53 = sld [smem:[#allocation2 + $0x3]]
    %s54 = sld [smem:[#allocation2 + $0x4]]
    %v55 = vld [vmem:[#allocation6] sm:$0xf]
    %v56 = vld [vmem:[#allocation7] sm:$0xf]
    %v57 = vstv %s50
    %v58 = vmul.f32 %v57, %v55
    %v59 = vstv %s51
    %v60 = vmul.f32 %v59, %v56
    %v61 = vadd.f32 %v58, %v60
    %v62 = vstv %s52
    %v63 = vadd.f32 %v61, %v62
    %vm64 = vcmask 1043456
    %v65 = vsel %vm64, %v63, 0.0
    %66 = vadd.xlane.f32.xlu0 %v65
    %v67 = vpop.xlane.xlu0 %66
    %v68 = vrot.slane %v67, 4
    %v69 = vadd.f32 %v67, %v68
    %v70 = vrot.slane %v69, 2
    %v71 = vadd.f32 %v69, %v70
    %v72 = vrot.slane %v71, 1
    %v73 = vadd.f32 %v71, %v72
    %s74 = vtos %v73
    %v75 = vmul.f32 %v63, %v63
    %v76 = vsel %vm64, %v75, 0.0
    %77 = vadd.xlane.f32.xlu0 %v76
    %v78 = vpop.xlane.xlu0 %77
    %v79 = vrot.slane %v78, 4
    %v80 = vadd.f32 %v78, %v79
    %v81 = vrot.slane %v80, 2
    %v82 = vadd.f32 %v80, %v81
    %v83 = vrot.slane %v82, 1
    %v84 = vadd.f32 %v82, %v83
    %s85 = vtos %v84
    %s86 = smul.f32 %s74, 0.001953125
    %s87 = smul.f32 %s85, 0.001953125
    %s88 = smul.f32 %s86, %s86
    %s89 = ssub.f32 %s87, %s88
    %s90 = smax.f32 %s89, 0.0
    %s91 = sadd.f32 %s90, 1e-05
    %v92 = vstv %s91
    %v93 = vrsqrt.pop %v92
    %s94 = vtos %v93
    %s95 = smul.f32 %s53, %s94
    %s96 = smul.f32 %s86, %s95
    %s97 = ssub.f32 %s54, %s96
    %v98 = vstv %s95
    %v99 = vmul.f32 %v63, %v98
    %v100 = vstv %s97
    %v101 = vadd.f32 %v99, %v100
    %vm102 = vcmp.ge.f32.partialorder %v101, 0.0
    %v103 = vmul.f32 %v101, 0.2
    %v104 = vsel %vm102, %v101, %v103
    %105 = vst [vmem:[#allocation9] sm:$0xf] %v104
    // Predicated region
    $region26: #{tpu_custom_call.1} parent=1 // pred_check
      _
    $region27: #{tpu_custom_call.1} parent=1 // pred_check_branch
      %107 = sbr.rel (0) target = $region29
    $region28: #{tpu_custom_call.1} parent=1 // pred_region
      %s109 = ssub.s32 64, 64
      %110 = vsyncadd [#allocation4], %s109
      %s112 = sshll.u32 [#allocation9], 4
      %s113 = int_to_ptr.vmem [resolvable:$true] %s112
      %115 = dma.vmem_to_hbm [thread:$0]  %s113, 64, %s3, [#allocation4]
    $region29: #{tpu_custom_call.1} parent=1 // pred_fallthru
      _
    // Predicated region
    $region30: #{tpu_custom_call.1} parent=1 // pred_check
      _
    $region31: #{tpu_custom_call.1} parent=1 // pred_check_branch
      %117 = sbr.rel (0) target = $region33
    $region32: #{tpu_custom_call.1} parent=1 // pred_region
      %118 = dma.done [#allocation4], 64
    $region33: #{tpu_custom_call.1} parent=1 // pred_fallthru
      _
    %119 = vsyncpa [#allocation3], 1
    %120 = vsyncpa [#allocation8], 1
    %121 = vsyncpa [#allocation4], 1
    %122 = vsyncpa [#allocation5], 1

</llo_original>
